<compile_context>
chip_gen: v6e
topology: v6e:2x2x1
jax: 0.10.0
libtpu: 0.0.40
codegen_flags: <defaults>
</compile_context>

<pallas_src>
import functools

import jax
import jax.numpy as jnp
from jax.experimental import pallas as pl
from jax.experimental.pallas import tpu as pltpu

_EPS = 1e-6
_PALLAS_MIN_ELEMS = 4096              # below this a pallas_call is pure launch overhead
_BLOCK_BYTES = 2 * 1024 * 1024        # per-buffer block budget (safe v5e/v6e/v7x)
_MIN_SPLIT_BYTES = 512 * 1024         # above this, force >= 2 grid blocks (v7x 2 TCs)
_VMEM_LIMIT = 32 * 1024 * 1024        # explicit scoped-VMEM cap (plenty of headroom)
_COL_CANDIDATES = (8192, 6144, 4096, 3072, 2048, 1536, 1024, 768, 512, 384, 256, 128)


def _round_up(x, m):
    return (x + m - 1) // m * m


def _pick_cols(n):
    """Largest lane-dense (multiple-of-128) divisor of n, or None."""
    for c in _COL_CANDIDATES:
        if n % c == 0:
            return c
    return None


# ------------------------------ Pallas kernels ----------------------------- #
def _lsq_per_tensor_kernel(params_ref, x_ref, o_ref, *, min_q, max_q):
    """Per-tensor quantize.  params_ref: SMEM (2,) = [scale, 1/scale]."""
    s = params_ref[0]
    inv = params_ref[1]
    x = x_ref[...].astype(jnp.float32)
    q = jnp.clip(jnp.round(x * inv), float(min_q), float(max_q))
    o_ref[...] = (q * s).astype(o_ref.dtype)


def _lsq_channelwise_kernel(p_ref, x_ref, o_ref, *, min_q, max_q):
    """Channel-wise quantize.  p_ref: VMEM (bm, 2) = per-row [scale, 1/scale]."""
    p = p_ref[...].astype(jnp.float32)
    s = p[:, 0:1]                       # (bm, 1) broadcast over lanes
    inv = p[:, 1:2]
    x = x_ref[...].astype(jnp.float32)
    q = jnp.clip(jnp.round(x * inv), float(min_q), float(max_q))
    o_ref[...] = (q * s).astype(o_ref.dtype)


# ------------------------------ jitted wrappers ----------------------------- #
@functools.partial(jax.jit, static_argnames=("cols", "min_q", "max_q"))
def _lsq_per_tensor(inp, scale, *, cols, min_q, max_q):
    orig_shape = inp.shape
    n = inp.size
    rows = n // cols
    x2 = inp.reshape(rows, cols)            # free bitcast (contiguous, row-major)

    s = jnp.clip(scale.reshape(-1).astype(jnp.float32), _EPS)[0]
    params = jnp.stack([s, 1.0 / s])        # (2,) -> SMEM

    itemsize = jnp.dtype(inp.dtype).itemsize
    sub = max(8, 32 // itemsize)            # sublane packing: 8 f32 / 16 bf16 / 32 i8
    budget = _BLOCK_BYTES // itemsize
    bm_cap = max(sub, (budget // cols) // sub * sub)
    bm = rows if rows <= bm_cap else bm_cap
    # v7x megacore: make sure there are >= 2 parallel blocks for non-tiny tensors.
    if pl.cdiv(rows, bm) == 1 and n * itemsize > _MIN_SPLIT_BYTES and rows >= 2 * sub:
        bm = _round_up(pl.cdiv(rows, 2), sub)
    grid = (pl.cdiv(rows, bm),)

    ce = pl.CostEstimate(flops=5 * n, transcendentals=0,
                         bytes_accessed=2 * n * itemsize)

    out2 = pl.pallas_call(
        functools.partial(_lsq_per_tensor_kernel, min_q=min_q, max_q=max_q),
        out_shape=jax.ShapeDtypeStruct((rows, cols), inp.dtype),
        grid=grid,
        in_specs=[
            pl.BlockSpec(memory_space=pltpu.MemorySpace.SMEM),
            pl.BlockSpec((bm, cols), lambda i: (i, 0)),
        ],
        out_specs=pl.BlockSpec((bm, cols), lambda i: (i, 0)),
        compiler_params=pltpu.CompilerParams(
            dimension_semantics=("parallel",),
            vmem_limit_bytes=_VMEM_LIMIT),
        cost_estimate=ce,
    )(params, x2)
    return out2.reshape(orig_shape)


@functools.partial(jax.jit, static_argnames=("min_q", "max_q"))
def _lsq_channelwise(inp, scale, *, min_q, max_q):
    orig_shape = inp.shape
    rows = orig_shape[0]
    cols = inp.size // rows
    n = inp.size
    x2 = inp.reshape(rows, cols)            # free bitcast

    s = jnp.clip(scale.astype(jnp.float32), _EPS)[:rows]
    params = jnp.stack([s, 1.0 / s], axis=1)    # (rows, 2), tiny VMEM side input

    itemsize = jnp.dtype(inp.dtype).itemsize
    sub = max(8, 32 // itemsize)
    budget = _BLOCK_BYTES // itemsize
    # Wide-lane first: full cols if at least `sub` rows fit the budget.
    if cols <= max(128, budget // sub):
        bn = cols
    else:
        bn = max(128, (budget // sub) // 128 * 128)
    bm_cap = max(sub, (budget // bn) // sub * sub)
    bm = rows if rows <= bm_cap else bm_cap
    # v7x megacore: >= 2 blocks for non-tiny tensors.
    if (pl.cdiv(rows, bm) * pl.cdiv(cols, bn) == 1
            and n * itemsize > _MIN_SPLIT_BYTES):
        if rows >= 2 * sub:
            bm = _round_up(pl.cdiv(rows, 2), sub)
        elif cols >= 256:
            bn = _round_up(pl.cdiv(cols, 2), 128)
    grid = (pl.cdiv(rows, bm), pl.cdiv(cols, bn))

    ce = pl.CostEstimate(flops=5 * n, transcendentals=0,
                         bytes_accessed=2 * n * itemsize + rows * 8)

    out2 = pl.pallas_call(
        functools.partial(_lsq_channelwise_kernel, min_q=min_q, max_q=max_q),
        out_shape=jax.ShapeDtypeStruct((rows, cols), inp.dtype),
        grid=grid,
        in_specs=[
            pl.BlockSpec((bm, 2), lambda i, j: (i, 0)),
            pl.BlockSpec((bm, bn), lambda i, j: (i, j)),
        ],
        out_specs=pl.BlockSpec((bm, bn), lambda i, j: (i, j)),
        compiler_params=pltpu.CompilerParams(
            dimension_semantics=("parallel", "parallel"),
            vmem_limit_bytes=_VMEM_LIMIT),
        cost_estimate=ce,
    )(params, x2)
    return out2.reshape(orig_shape)


@functools.partial(jax.jit, static_argnames=("min_q", "max_q", "scale_num"))
def _lsq_small(inp, scale, *, min_q, max_q, scale_num):
    """Fused-XLA elementwise path: tiny tensors, ragged total sizes (no lane-dense
    zero-copy reshape exists) and narrow (<128-lane) channel-wise weights.  XLA
    fuses this into a single pass reading/writing exactly 2N bytes."""
    s = jnp.clip(scale.astype(jnp.float32), _EPS)
    if scale_num == 1:
        cur = s.reshape((1,) * inp.ndim)
    else:
        cur = s[: inp.shape[0]].reshape((inp.shape[0],) + (1,) * (inp.ndim - 1))
    x = inp.astype(jnp.float32)
    q = jnp.clip(jnp.round(x * (1.0 / cur)), float(min_q), float(max_q))
    return (q * cur).astype(inp.dtype)


# --------------------------------- module ----------------------------------- #
class LSQQuantizerInitPTQ:
    """JAX/Pallas port of PyTorch LSQQuantizerInitPTQ forward (non-calib path)."""

    def __init__(self, quant_bit, scale_num=1, quant_on_weight=False):
        assert scale_num == 1 or quant_on_weight, \
            "Channel_wise only can be used on weight quantization."
        self.quant_bit = quant_bit
        self.scale_num = scale_num
        self.quant_on_weight = quant_on_weight
        if quant_on_weight:
            self.min_q = -(2 ** (quant_bit - 1))
            self.max_q = 2 ** (quant_bit - 1) - 1
        else:
            self.min_q = 0
            self.max_q = 2 ** quant_bit - 1
        # parameter: torch.ones(scale_num)
        self.scale = jnp.ones((scale_num,), dtype=jnp.float32)
        self.eps = _EPS
        # TODO(synk): calib-mode running `max_val` update, calc_qparams() and
        # the torch.onnx export branch are stateful / export-only paths and
        # are not ported here.

    def __call__(self, inp):
        # NOTE: torch's `assert self.quant_on_weight or inp.min() >= 0` is a
        # host-synchronizing full reduction; intentionally omitted (negative
        # activations are silently clipped to 0 instead of raising).
        # `g = 1/sqrt(numel * max_q)` only rescales gradients via grad_scale();
        # the forward value is unchanged, so it is dropped.
        if self.scale_num > 1:
            assert inp.shape[0] <= self.scale_num, \
                "channel-wise quantization needs inp.shape[0] <= scale_num"

        n = inp.size
        if n < _PALLAS_MIN_ELEMS:
            return _lsq_small(inp, self.scale, min_q=self.min_q,
                              max_q=self.max_q, scale_num=self.scale_num)

        if self.scale_num == 1:
            cols = _pick_cols(n)
            if cols is None:
                # N not a multiple of 128: a 2-D reshape would need a full
                # pad + slice (~2x HBM traffic); the fused XLA path is already
                # at the 2N-byte roofline.
                # TODO(synk): 1-D ragged-masked Pallas grid for this case.
                return _lsq_small(inp, self.scale, min_q=self.min_q,
                                  max_q=self.max_q, scale_num=1)
            return _lsq_per_tensor(inp, self.scale, cols=cols,
                                   min_q=self.min_q, max_q=self.max_q)

        cols = n // inp.shape[0]
        if cols < 128:
            # narrow lane dim -> masked partial stores would waste bandwidth
            return _lsq_small(inp, self.scale, min_q=self.min_q,
                              max_q=self.max_q, scale_num=self.scale_num)
        return _lsq_channelwise(inp, self.scale, min_q=self.min_q,
                                max_q=self.max_q)


# ----------------------------- pure-JAX reference --------------------------- #
def _reference(inp, scale, scale_num, min_q, max_q):
    s = jnp.clip(scale.astype(jnp.float32), _EPS)
    if scale_num == 1:
        cur = s.reshape((1,) * inp.ndim)
    else:
        cur = s[: inp.shape[0]].reshape((inp.shape[0],) + (1,) * (inp.ndim - 1))
    x = inp.astype(jnp.float32)
    q = jnp.clip(jnp.round(x * (1.0 / cur)), min_q, max_q)
    return (q * cur).astype(inp.dtype)


if __name__ == "__main__":
    key = jax.random.PRNGKey(0)
    k1, k2, k3, k4, k5 = jax.random.split(key, 5)

    # 1) activation quantizer: per-tensor, unsigned range (Pallas per-tensor path)
    x_act = jnp.abs(jax.random.normal(k1, (2, 8, 32, 32), dtype=jnp.float32))
    q_act = LSQQuantizerInitPTQ(quant_bit=8, scale_num=1, quant_on_weight=False)
    q_act.scale = jnp.array([0.05], dtype=jnp.float32)
    out_act = jax.block_until_ready(q_act(x_act))
    ref_act = _reference(x_act, q_act.scale, 1, q_act.min_q, q_act.max_q)
    assert jnp.allclose(out_act, ref_act, atol=1e-5), "per-tensor (activation) mismatch"

    # 2) small channel-wise weight: takes the fused-XLA fallback
    w_small = jax.random.normal(k2, (4, 8, 3, 3), dtype=jnp.float32)
    q_ws = LSQQuantizerInitPTQ(quant_bit=8, scale_num=4, quant_on_weight=True)
    q_ws.scale = 0.01 + 0.01 * jnp.arange(4, dtype=jnp.float32)
    out_ws = jax.block_until_ready(q_ws(w_small))
    ref_ws = _reference(w_small, q_ws.scale, 4, q_ws.min_q, q_ws.max_q)
    assert jnp.allclose(out_ws, ref_ws, atol=1e-5), "small channel-wise mismatch"

    # 3) larger channel-wise weight: exercises the channel-wise Pallas path
    w_big = jax.random.normal(k3, (16, 32, 8, 8), dtype=jnp.float32)
    q_wb = LSQQuantizerInitPTQ(quant_bit=4, scale_num=16, quant_on_weight=True)
    q_wb.scale = 0.02 + 0.005 * jnp.arange(16, dtype=jnp.float32)
    out_wb = jax.block_until_ready(q_wb(w_big))
    ref_wb = _reference(w_big, q_wb.scale, 16, q_wb.min_q, q_wb.max_q)
    assert jnp.allclose(out_wb, ref_wb, atol=1e-5), "channel-wise Pallas mismatch"

    # 4) per-tensor with N not a multiple of 128 (ragged -> fused-XLA fallback,
    #    no pad/slice round trips)
    x_odd = jnp.abs(jax.random.normal(k4, (3, 5, 14, 22), dtype=jnp.float32))
    q_odd = LSQQuantizerInitPTQ(quant_bit=8, scale_num=1, quant_on_weight=False)
    q_odd.scale = jnp.array([0.03], dtype=jnp.float32)
    out_odd = jax.block_until_ready(q_odd(x_odd))
    ref_odd = _reference(x_odd, q_odd.scale, 1, q_odd.min_q, q_odd.max_q)
    assert jnp.allclose(out_odd, ref_odd, atol=1e-5), "per-tensor ragged mismatch"

    # 5) larger per-tensor activation: exercises the multi-block (>=2 parallel
    #    blocks for v7x) per-tensor Pallas path
    x_big = jnp.abs(jax.random.normal(k5, (4, 64, 32, 32), dtype=jnp.float32))
    q_big = LSQQuantizerInitPTQ(quant_bit=8, scale_num=1, quant_on_weight=False)
    q_big.scale = jnp.array([0.07], dtype=jnp.float32)
    out_big = jax.block_until_ready(q_big(x_big))
    ref_big = _reference(x_big, q_big.scale, 1, q_big.min_q, q_big.max_q)
    assert jnp.allclose(out_big, ref_big, atol=1e-5), "per-tensor multi-block mismatch"

    print("KERNEL_OK")
</pallas_src>

<mosaic_0001>
module attributes {stable_mosaic.version = 11 : i64} {
  func.func @_lsq_per_tensor_kernel(%arg0: i32, %arg1: memref<2xf32, #tpu.memory_space<smem>>, %arg2: memref<2x8192xf32, #tpu.memory_space<vmem>>, %arg3: memref<2x8192xf32, #tpu.memory_space<vmem>>) attributes {dimension_semantics = [#tpu.dimension_semantics<parallel>], iteration_bounds = array<i64: 1>, scalar_prefetch = 0 : i64, scratch_operands = 0 : i64, tpu.core_type = #tpu.core_type<tc>, window_params = [{transform_indices = @transform_0, window_bounds = array<i64: 2>}, {transform_indices = @transform_1, window_bounds = array<i64: 2, 8192>}, {transform_indices = @transform_2, window_bounds = array<i64: 2, 8192>}]} {
    %c0 = arith.constant 0 : index
    %0 = memref.load %arg1[%c0] : memref<2xf32, #tpu.memory_space<smem>>
    %c1 = arith.constant 1 : index
    %1 = memref.load %arg1[%c1] : memref<2xf32, #tpu.memory_space<smem>>
    %c0_0 = arith.constant 0 : index
    %c0_1 = arith.constant 0 : index
    %2 = vector.load %arg2[%c0_0, %c0_1] : memref<2x8192xf32, #tpu.memory_space<vmem>>, vector<2x8192xf32>
    %3 = vector.broadcast %1 : f32 to vector<2x8192xf32>
    %4 = arith.mulf %2, %3 : vector<2x8192xf32>
    %5 = math.roundeven %4 : vector<2x8192xf32>
    %cst = arith.constant 0.000000e+00 : f32
    %cst_2 = arith.constant 2.550000e+02 : f32
    %6 = vector.broadcast %cst : f32 to vector<2x8192xf32>
    %7 = arith.maximumf %6, %5 : vector<2x8192xf32>
    %8 = vector.broadcast %cst_2 : f32 to vector<2x8192xf32>
    %9 = arith.minimumf %8, %7 : vector<2x8192xf32>
    %10 = vector.broadcast %0 : f32 to vector<2x8192xf32>
    %11 = arith.mulf %9, %10 : vector<2x8192xf32>
    %c0_3 = arith.constant 0 : index
    %c0_4 = arith.constant 0 : index
    %12 = vector.load %arg3[%c0_3, %c0_4] : memref<2x8192xf32, #tpu.memory_space<vmem>>, vector<2x8192xf32>
    tpu.vector_store %arg3[%c0_3, %c0_4], %11 {strides = array<i32>} : memref<2x8192xf32, #tpu.memory_space<vmem>>, vector<2x8192xf32>,
    return
  }
  func.func @transform_0(%arg0: i32) -> i32 {
    %c0_i32 = arith.constant 0 : i32
    %c0_i32_0 = arith.constant 0 : i32
    return %c0_i32 : i32
  }
  func.func @transform_1(%arg0: i32) -> (i32, i32) {
    %c0_i32 = arith.constant 0 : i32
    %c0_i32_0 = arith.constant 0 : i32
    return %arg0, %c0_i32 : i32, i32
  }
  func.func @transform_2(%arg0: i32) -> (i32, i32) {
    %c0_i32 = arith.constant 0 : i32
    %c0_i32_0 = arith.constant 0 : i32
    return %arg0, %c0_i32 : i32, i32
  }
}

</mosaic_0001>

<llo_original>
// kernel: _lsq_per_tensor.1
$region0: #{_lsq_per_tensor.1}
  #allocation0 [shape = 'u32[]', space=smem, size = 0x4, offset = 0x4, fixed_abs, tag = 'smem constant byte address 0x4 - core index']
  #allocation1 [shape = 'u32[144,128]{1,0:T(1,128)}', space=vmem, size = 0x12000, scoped, tag = 'internal scratch']
  %s0 = inlined_call_operand.vmem [shape: f32[2], index: 0, kind: input, shape index: {}]
  %s1 = inlined_call_operand.vmem [shape: f32[2,8192], index: 1, kind: input, shape index: {}]
  %s2 = inlined_call_operand.vmem [shape: f32[2,8192], index: 2, kind: output, shape index: {}]
  %s3 = sld [smem:[#allocation0]]
  $region22: #{_lsq_per_tensor.1} parent=0
    _
  %s5 = ssub.s32 1, %s3
  %s6 = scalar_select 0, %s5, %s3
  $region1: #{_lsq_per_tensor.1} parent=0
    #allocation2 [shape = 'u8[512]{0}', space=smem, size = 0x200, scoped, tag = 'input window, operand 0, single buffered']
    #allocation3 [shape = 's32[1]{0}', space=sflag, size = 0x4, scoped, tag = 'scoped memory for _lsq_per_tensor.1']
    %7 = vsyncpa [#allocation3], 0
    // Predicated region
    $region2: #{_lsq_per_tensor.1} parent=1 // pred_check
      _
    $region3: #{_lsq_per_tensor.1} parent=1 // pred_check_branch
      %9 = sbr.rel (0) target = $region5
    $region4: #{_lsq_per_tensor.1} parent=1 // pred_region
      %s11 = ssub.s32 16, 16
      %12 = vsyncadd [#allocation3], %s11
      %s14 = sshll.u32 %s0, 4
      %s15 = int_to_ptr.vmem [resolvable:$true] %s14
      %17 = dma.vmem_to_smem %s15, 16, [#allocation2], [#allocation3]
    $region5: #{_lsq_per_tensor.1} parent=1 // pred_fallthru
      _
    // Predicated region
    $region6: #{_lsq_per_tensor.1} parent=1 // pred_check
      _
    $region7: #{_lsq_per_tensor.1} parent=1 // pred_check_branch
      %19 = sbr.rel (0) target = $region9
    $region8: #{_lsq_per_tensor.1} parent=1 // pred_region
      _
    $region9: #{_lsq_per_tensor.1} parent=1 // pred_fallthru
      _
    // Predicated region
    $region10: #{_lsq_per_tensor.1} parent=1 // pred_check
      _
    $region11: #{_lsq_per_tensor.1} parent=1 // pred_check_branch
      %21 = sbr.rel (0) target = $region13
    $region12: #{_lsq_per_tensor.1} parent=1 // pred_region
      %22 = dma.done [#allocation3], 16
    $region13: #{_lsq_per_tensor.1} parent=1 // pred_fallthru
      _
    %23 = sfence
    %s24 = sld [smem:[#allocation2]]
    %s25 = sld [smem:[#allocation2 + $0x1]]
    %v26 = vld [vmem:[%s1] sm:$0xff]
    %v27 = vld [vmem:[%s1 + $0x8] sm:$0xff]
    %v28 = vld [vmem:[%s1 + $0x10] sm:$0xff]
    %v29 = vld [vmem:[%s1 + $0x18] sm:$0xff]
    %v30 = vld [vmem:[%s1 + $0x20] sm:$0xff]
    %v31 = vld [vmem:[%s1 + $0x28] sm:$0xff]
    %v32 = vld [vmem:[%s1 + $0x30] sm:$0xff]
    %v33 = vld [vmem:[%s1 + $0x38] sm:$0xff]
    %v34 = vld [vmem:[%s1 + $0x40] sm:$0xff]
    %v35 = vld [vmem:[%s1 + $0x48] sm:$0xff]
    %v36 = vld [vmem:[%s1 + $0x50] sm:$0xff]
    %v37 = vld [vmem:[%s1 + $0x58] sm:$0xff]
    %v38 = vld [vmem:[%s1 + $0x60] sm:$0xff]
    %v39 = vld [vmem:[%s1 + $0x68] sm:$0xff]
    %v40 = vld [vmem:[%s1 + $0x70] sm:$0xff]
    %v41 = vld [vmem:[%s1 + $0x78] sm:$0xff]
    %v42 = vstv %s25
    %v43 = vmul.f32 %v26, %v42
    %v44 = vmul.f32 %v27, %v42
    %v45 = vmul.f32 %v28, %v42
    %v46 = vmul.f32 %v29, %v42
    %v47 = vmul.f32 %v30, %v42
    %v48 = vmul.f32 %v31, %v42
    %v49 = vmul.f32 %v32, %v42
    %v50 = vmul.f32 %v33, %v42
    %v51 = vmul.f32 %v34, %v42
    %v52 = vmul.f32 %v35, %v42
    %v53 = vmul.f32 %v36, %v42
    %v54 = vmul.f32 %v37, %v42
    %v55 = vmul.f32 %v38, %v42
    %v56 = vmul.f32 %v39, %v42
    %v57 = vmul.f32 %v40, %v42
    %v58 = vmul.f32 %v41, %v42
    %v59 = vround.ne.pseudo %v43
    %v60 = vround.ne.pseudo %v44
    %v61 = vround.ne.pseudo %v45
    %v62 = vround.ne.pseudo %v46
    %v63 = vround.ne.pseudo %v47
    %v64 = vround.ne.pseudo %v48
    %v65 = vround.ne.pseudo %v49
    %v66 = vround.ne.pseudo %v50
    %v67 = vround.ne.pseudo %v51
    %v68 = vround.ne.pseudo %v52
    %v69 = vround.ne.pseudo %v53
    %v70 = vround.ne.pseudo %v54
    %v71 = vround.ne.pseudo %v55
    %v72 = vround.ne.pseudo %v56
    %v73 = vround.ne.pseudo %v57
    %v74 = vround.ne.pseudo %v58
    %v75 = vmax.f32 %v59, 0.0
    %v76 = vmax.f32 %v60, 0.0
    %v77 = vmax.f32 %v61, 0.0
    %v78 = vmax.f32 %v62, 0.0
    %v79 = vmax.f32 %v63, 0.0
    %v80 = vmax.f32 %v64, 0.0
    %v81 = vmax.f32 %v65, 0.0
    %v82 = vmax.f32 %v66, 0.0
    %v83 = vmax.f32 %v67, 0.0
    %v84 = vmax.f32 %v68, 0.0
    %v85 = vmax.f32 %v69, 0.0
    %v86 = vmax.f32 %v70, 0.0
    %v87 = vmax.f32 %v71, 0.0
    %v88 = vmax.f32 %v72, 0.0
    %v89 = vmax.f32 %v73, 0.0
    %v90 = vmax.f32 %v74, 0.0
    %v91 = vmin.f32 %v75, 255.0
    %v92 = vmin.f32 %v76, 255.0
    %v93 = vmin.f32 %v77, 255.0
    %v94 = vmin.f32 %v78, 255.0
    %v95 = vmin.f32 %v79, 255.0
    %v96 = vmin.f32 %v80, 255.0
    %v97 = vmin.f32 %v81, 255.0
    %v98 = vmin.f32 %v82, 255.0
    %v99 = vmin.f32 %v83, 255.0
    %v100 = vmin.f32 %v84, 255.0
    %v101 = vmin.f32 %v85, 255.0
    %v102 = vmin.f32 %v86, 255.0
    %v103 = vmin.f32 %v87, 255.0
    %v104 = vmin.f32 %v88, 255.0
    %v105 = vmin.f32 %v89, 255.0
    %v106 = vmin.f32 %v90, 255.0
    %v107 = vstv %s24
    %v108 = vmul.f32 %v91, %v107
    %v109 = vmul.f32 %v92, %v107
    %v110 = vmul.f32 %v93, %v107
    %v111 = vmul.f32 %v94, %v107
    %v112 = vmul.f32 %v95, %v107
    %v113 = vmul.f32 %v96, %v107
    %v114 = vmul.f32 %v97, %v107
    %v115 = vmul.f32 %v98, %v107
    %v116 = vmul.f32 %v99, %v107
    %v117 = vmul.f32 %v100, %v107
    %v118 = vmul.f32 %v101, %v107
    %v119 = vmul.f32 %v102, %v107
    %v120 = vmul.f32 %v103, %v107
    %v121 = vmul.f32 %v104, %v107
    %v122 = vmul.f32 %v105, %v107
    %v123 = vmul.f32 %v106, %v107
    %124 = vst [vmem:[%s2] sm:$0xff] %v108
    %125 = vst [vmem:[%s2 + $0x8] sm:$0xff] %v109
    %126 = vst [vmem:[%s2 + $0x10] sm:$0xff] %v110
    %127 = vst [vmem:[%s2 + $0x18] sm:$0xff] %v111
    %128 = vst [vmem:[%s2 + $0x20] sm:$0xff] %v112
    %129 = vst [vmem:[%s2 + $0x28] sm:$0xff] %v113
    %130 = vst [vmem:[%s2 + $0x30] sm:$0xff] %v114
    %131 = vst [vmem:[%s2 + $0x38] sm:$0xff] %v115
    %132 = vst [vmem:[%s2 + $0x40] sm:$0xff] %v116
    %133 = vst [vmem:[%s2 + $0x48] sm:$0xff] %v117
    %134 = vst [vmem:[%s2 + $0x50] sm:$0xff] %v118
    %135 = vst [vmem:[%s2 + $0x58] sm:$0xff] %v119
    %136 = vst [vmem:[%s2 + $0x60] sm:$0xff] %v120
    %137 = vst [vmem:[%s2 + $0x68] sm:$0xff] %v121
    %138 = vst [vmem:[%s2 + $0x70] sm:$0xff] %v122
    %139 = vst [vmem:[%s2 + $0x78] sm:$0xff] %v123
    // Predicated region
    $region14: #{_lsq_per_tensor.1} parent=1 // pred_check
      _
    $region15: #{_lsq_per_tensor.1} parent=1 // pred_check_branch
      %141 = sbr.rel (0) target = $region17
    $region16: #{_lsq_per_tensor.1} parent=1 // pred_region
      _
    $region17: #{_lsq_per_tensor.1} parent=1 // pred_fallthru
      _
    // Predicated region
    $region18: #{_lsq_per_tensor.1} parent=1 // pred_check
      _
    $region19: #{_lsq_per_tensor.1} parent=1 // pred_check_branch
      %143 = sbr.rel (0) target = $region21
    $region20: #{_lsq_per_tensor.1} parent=1 // pred_region
      _
    $region21: #{_lsq_per_tensor.1} parent=1 // pred_fallthru
      _
    %144 = vsyncpa [#allocation3], 1

</llo_original>
